<compile_context>
chip_gen: v7x
topology: tpu7x:2x2x1
jax: 0.10.0
libtpu: 0.0.40
codegen_flags: <defaults>
</compile_context>

<pallas_src>
import math
import numpy as np

import jax
import jax.numpy as jnp
from jax.experimental import pallas as pl
from jax.experimental.pallas import tpu as pltpu


# ------------------------------ Fused FFN kernel ------------------------------
def _ffn_kernel(x_ref, w1_ref, b1_ref, w2_ref, b2_ref, o_ref, acc_ref):
    """One (row-tile, d_ff-chunk) step of  y = relu(x@W1+b1) @ W2 + b2."""
    f = pl.program_id(1)

    @pl.when(f == 0)
    def _init():
        acc_ref[...] = jnp.zeros_like(acc_ref)

    # h_chunk = relu(x @ W1[:, chunk] + b1[chunk])      (tm, tf), f32 accumulate
    xb = x_ref[...].astype(jnp.bfloat16)
    h = jnp.dot(xb, w1_ref[...], preferred_element_type=jnp.float32)
    h = jnp.maximum(h + b1_ref[...], 0.0)

    # TODO(synk): nn.Dropout(p=0.1) omitted -- this is the deterministic /
    # eval-mode forward.  For training parity, mask `h` here with
    # pltpu.prng_seed + pltpu.prng_random_bits (keeps the hidden activation
    # fused in VMEM instead of round-tripping through HBM).

    # acc += h_chunk @ W2[chunk, :]                      (tm, Dout), f32 scratch
    acc_ref[...] += jnp.dot(h.astype(jnp.bfloat16), w2_ref[...],
                            preferred_element_type=jnp.float32)

    @pl.when(f == pl.num_programs(1) - 1)
    def _finalize():
        o_ref[...] = (acc_ref[...] + b2_ref[...]).astype(o_ref.dtype)


# --------------------------------- Tiling -------------------------------------
def _pick_tm(M: int) -> int:
    """Row tile: multiple of 256 (fills the 256-wide MXU on v6e/v7x) when M is
    large, otherwise a single lane/sublane-aligned block (no forced split —
    extra grid steps only cost overhead on single-TC v5e/v6e)."""
    Mr = ((M + 7) // 8) * 8
    return 256 if Mr >= 256 else max(Mr, 8)


def _pick_tf(d_ff: int) -> int:
    """Largest lane-dense d_ff chunk (<=1024) that divides d_ff; it must divide
    exactly because this is a reduction axis (padding would contaminate acc)."""
    for tf in (1024, 512, 256, 128):
        if d_ff % tf == 0:
            return tf
    return d_ff


def positionwise_ffn(x, w1, b1, w2, b2, *, tm=None, tf=None):
    """y = relu(x @ w1 + b1) @ w2 + b2, applied over the last dim of x."""
    orig_shape = x.shape
    D = orig_shape[-1]
    d_ff = w1.shape[1]
    Dout = w2.shape[1]

    x2d = x.reshape(-1, D)
    M = x2d.shape[0]
    tm = _pick_tm(M) if tm is None else tm
    tf = _pick_tf(d_ff) if tf is None else tf
    assert d_ff % tf == 0, "d_ff chunk must evenly divide d_ff (reduction axis)"

    # bf16 MXU inputs for the weights, f32 biases / accumulation.
    w1 = w1.astype(jnp.bfloat16)
    w2 = w2.astype(jnp.bfloat16)
    b1_2d = b1.reshape(1, d_ff).astype(jnp.float32)
    b2_2d = b2.reshape(1, Dout).astype(jnp.float32)

    grid = (pl.cdiv(M, tm), d_ff // tf)

    # Explicit VMEM budget: double-buffered streaming tiles + f32 accumulator.
    x_bytes = x2d.dtype.itemsize
    o_bytes = x2d.dtype.itemsize
    budget = (2 * tm * D * x_bytes          # x row tiles
              + 2 * D * tf * 2              # W1 chunks (bf16)
              + 2 * tf * Dout * 2           # W2 chunks (bf16)
              + 2 * 1 * tf * 4              # b1 chunks (f32)
              + 2 * 1 * Dout * 4            # b2        (f32)
              + 2 * tm * Dout * o_bytes     # out row tiles
              + tm * Dout * 4)              # accumulator scratch
    vmem_limit = int(min(max(2 * budget + (4 << 20), 16 << 20), 64 << 20))

    out = pl.pallas_call(
        _ffn_kernel,
        out_shape=jax.ShapeDtypeStruct((M, Dout), x.dtype),
        grid_spec=pltpu.PrefetchScalarGridSpec(
            num_scalar_prefetch=0,
            grid=grid,
            in_specs=[
                pl.BlockSpec((tm, D),    lambda i, f: (i, 0)),  # x rows (resident across f)
                pl.BlockSpec((D, tf),    lambda i, f: (0, f)),  # W1 d_ff-slice (streams)
                pl.BlockSpec((1, tf),    lambda i, f: (0, f)),  # b1 d_ff-slice
                pl.BlockSpec((tf, Dout), lambda i, f: (f, 0)),  # W2 d_ff-slice (streams)
                pl.BlockSpec((1, Dout),  lambda i, f: (0, 0)),  # b2 (tiny, constant)
            ],
            out_specs=pl.BlockSpec((tm, Dout), lambda i, f: (i, 0)),
            scratch_shapes=[pltpu.VMEM((tm, Dout), jnp.float32)],
        ),
        compiler_params=pltpu.CompilerParams(
            dimension_semantics=("parallel", "arbitrary"),
            vmem_limit_bytes=vmem_limit),
    )(x2d, w1, b1_2d, w2, b2_2d)

    return out.reshape(orig_shape[:-1] + (Dout,))


# ----------------------------- Module equivalent ------------------------------
class PositionwiseFeedForwardPallas:
    """JAX/Pallas equivalent of PositionwiseFeedForward(d_model, d_ff)."""

    def __init__(self, d_model, d_ff, key, dropout=0.1):
        self.d_model = d_model
        self.d_ff = d_ff
        self.dropout_p = dropout  # eval-mode forward: dropout is identity

        # nn.Linear default init: U(-1/sqrt(fan_in), 1/sqrt(fan_in)).
        # Weights stored as (in, out) in bf16 so y = x @ W + b feeds bf16 MXU.
        k1, k2, k3, k4 = jax.random.split(key, 4)
        b1_bound = 1.0 / math.sqrt(d_model)
        b2_bound = 1.0 / math.sqrt(d_ff)
        self.W1 = jax.random.uniform(k1, (d_model, d_ff), jnp.float32,
                                     -b1_bound, b1_bound).astype(jnp.bfloat16)
        self.b1 = jax.random.uniform(k2, (d_ff,), jnp.float32,
                                     -b1_bound, b1_bound)
        self.W2 = jax.random.uniform(k3, (d_ff, d_model), jnp.float32,
                                     -b2_bound, b2_bound).astype(jnp.bfloat16)
        self.b2 = jax.random.uniform(k4, (d_model,), jnp.float32,
                                     -b2_bound, b2_bound)

    def __call__(self, x, **tiling):
        return positionwise_ffn(x, self.W1, self.b1, self.W2, self.b2, **tiling)


# ----------------------------- Pure-JAX reference -----------------------------
def reference_forward(module, x):
    """Same bf16-inputs / f32-accumulation math as the kernel."""
    xb = x.astype(jnp.bfloat16)
    h = jnp.dot(xb, module.W1, preferred_element_type=jnp.float32) + module.b1
    h = jnp.maximum(h, 0.0).astype(jnp.bfloat16)
    y = jnp.dot(h, module.W2, preferred_element_type=jnp.float32) + module.b2
    return y.astype(x.dtype)


# ----------------------------------- Main --------------------------------------
if __name__ == "__main__":
    root = jax.random.PRNGKey(0)
    kx, kp = jax.random.split(root, 2)

    # Small, lane-dense shapes: d_model, d_ff multiples of 128; M = B*S = 64.
    B, S, d_model, d_ff = 2, 32, 128, 512
    x = jax.random.normal(kx, (B, S, d_model), jnp.float32)

    ffn = PositionwiseFeedForwardPallas(d_model, d_ff, kp)
    # tm=32 / tf=256 exercises both the parallel row axis and the d_ff
    # reduction-accumulator path (grid = (2, 2)); defaults auto-pick otherwise.
    out = jax.block_until_ready(ffn(x, tm=32, tf=256))

    ref = reference_forward(ffn, x)
    assert out.shape == (B, S, d_model)
    np.testing.assert_allclose(np.asarray(out), np.asarray(ref),
                               rtol=2e-2, atol=2e-2)
    print("KERNEL_OK")
</pallas_src>

<mosaic_0001>
module attributes {stable_mosaic.version = 11 : i64} {
  func.func @_ffn_kernel(%arg0: i32, %arg1: i32, %arg2: memref<32x128xf32, #tpu.memory_space<vmem>>, %arg3: memref<128x256xbf16, #tpu.memory_space<vmem>>, %arg4: memref<1x256xf32, #tpu.memory_space<vmem>>, %arg5: memref<256x128xbf16, #tpu.memory_space<vmem>>, %arg6: memref<1x128xf32, #tpu.memory_space<vmem>>, %arg7: memref<32x128xf32, #tpu.memory_space<vmem>>, %arg8: memref<32x128xf32, #tpu.memory_space<vmem>>) attributes {dimension_semantics = [#tpu.dimension_semantics<parallel>, #tpu.dimension_semantics<arbitrary>], iteration_bounds = array<i64: 2, 2>, scalar_prefetch = 0 : i64, scratch_operands = 1 : i64, tpu.core_type = #tpu.core_type<tc>, window_params = [{transform_indices = @transform_0, window_bounds = array<i64: 32, 128>}, {transform_indices = @transform_1, window_bounds = array<i64: 128, 256>}, {transform_indices = @transform_2, window_bounds = array<i64: 1, 256>}, {transform_indices = @transform_3, window_bounds = array<i64: 256, 128>}, {pipeline_mode = #tpu.pipeline_mode<synchronous>, transform_indices = @transform_4, window_bounds = array<i64: 1, 128>}, {transform_indices = @transform_5, window_bounds = array<i64: 32, 128>}]} {
    %c0_i32 = arith.constant 0 : i32
    %0 = arith.cmpi eq, %arg1, %c0_i32 : i32
    %1 = arith.extui %0 : i1 to i32
    %c0_i32_0 = arith.constant 0 : i32
    %2 = arith.cmpi ne, %1, %c0_i32_0 : i32
    scf.if %2 {
      %cst_15 = arith.constant 0.000000e+00 : f32
      %21 = vector.broadcast %cst_15 : f32 to vector<32x128xf32>
      %c0_16 = arith.constant 0 : index
      %c0_17 = arith.constant 0 : index
      %22 = vector.load %arg8[%c0_16, %c0_17] : memref<32x128xf32, #tpu.memory_space<vmem>>, vector<32x128xf32>
      tpu.vector_store %arg8[%c0_16, %c0_17], %21 {strides = array<i32>} : memref<32x128xf32, #tpu.memory_space<vmem>>, vector<32x128xf32>,
    } else {
    }
    %c0 = arith.constant 0 : index
    %c0_1 = arith.constant 0 : index
    %3 = vector.load %arg2[%c0, %c0_1] : memref<32x128xf32, #tpu.memory_space<vmem>>, vector<32x128xf32>
    %4 = arith.truncf %3 : vector<32x128xf32> to vector<32x128xbf16>
    %c0_2 = arith.constant 0 : index
    %c0_3 = arith.constant 0 : index
    %5 = vector.load %arg3[%c0_2, %c0_3] : memref<128x256xbf16, #tpu.memory_space<vmem>>, vector<128x256xbf16>
    %cst = arith.constant dense<0.000000e+00> : vector<32x256xf32>
    %6 = tpu.matmul %4, %5, %cst {dimension_numbers = #tpu.dot_dimension_numbers<[1], [0], [0], [1], [0, 0, 1, 1], [], []>} : vector<32x128xbf16>, vector<128x256xbf16>, vector<32x256xf32> -> vector<32x256xf32>
    %c0_4 = arith.constant 0 : index
    %c0_5 = arith.constant 0 : index
    %7 = vector.load %arg4[%c0_4, %c0_5] : memref<1x256xf32, #tpu.memory_space<vmem>>, vector<1x256xf32>
    %8 = vector.broadcast %7 : vector<1x256xf32> to vector<32x256xf32>
    %9 = arith.addf %6, %8 : vector<32x256xf32>
    %cst_6 = arith.constant 0.000000e+00 : f32
    %10 = vector.broadcast %cst_6 : f32 to vector<32x256xf32>
    %11 = arith.maximumf %9, %10 : vector<32x256xf32>
    %c0_7 = arith.constant 0 : index
    %c0_8 = arith.constant 0 : index
    %12 = vector.load %arg8[%c0_7, %c0_8] : memref<32x128xf32, #tpu.memory_space<vmem>>, vector<32x128xf32>
    %13 = arith.truncf %11 : vector<32x256xf32> to vector<32x256xbf16>
    %c0_9 = arith.constant 0 : index
    %c0_10 = arith.constant 0 : index
    %14 = vector.load %arg5[%c0_9, %c0_10] : memref<256x128xbf16, #tpu.memory_space<vmem>>, vector<256x128xbf16>
    %cst_11 = arith.constant dense<0.000000e+00> : vector<32x128xf32>
    %15 = tpu.matmul %13, %14, %cst_11 {dimension_numbers = #tpu.dot_dimension_numbers<[1], [0], [0], [1], [0, 0, 1, 1], [], []>} : vector<32x256xbf16>, vector<256x128xbf16>, vector<32x128xf32> -> vector<32x128xf32>
    %16 = arith.addf %12, %15 : vector<32x128xf32>
    %c0_12 = arith.constant 0 : index
    %c0_13 = arith.constant 0 : index
    %17 = vector.load %arg8[%c0_12, %c0_13] : memref<32x128xf32, #tpu.memory_space<vmem>>, vector<32x128xf32>
    tpu.vector_store %arg8[%c0_12, %c0_13], %16 {strides = array<i32>} : memref<32x128xf32, #tpu.memory_space<vmem>>, vector<32x128xf32>,
    %c1_i32 = arith.constant 1 : i32
    %18 = arith.cmpi eq, %arg1, %c1_i32 : i32
    %19 = arith.extui %18 : i1 to i32
    %c0_i32_14 = arith.constant 0 : i32
    %20 = arith.cmpi ne, %19, %c0_i32_14 : i32
    scf.if %20 {
      %c0_15 = arith.constant 0 : index
      %c0_16 = arith.constant 0 : index
      %21 = vector.load %arg8[%c0_15, %c0_16] : memref<32x128xf32, #tpu.memory_space<vmem>>, vector<32x128xf32>
      %c0_17 = arith.constant 0 : index
      %c0_18 = arith.constant 0 : index
      %22 = vector.load %arg6[%c0_17, %c0_18] : memref<1x128xf32, #tpu.memory_space<vmem>>, vector<1x128xf32>
      %23 = vector.broadcast %22 : vector<1x128xf32> to vector<32x128xf32>
      %24 = arith.addf %21, %23 : vector<32x128xf32>
      %c0_19 = arith.constant 0 : index
      %c0_20 = arith.constant 0 : index
      %25 = vector.load %arg7[%c0_19, %c0_20] : memref<32x128xf32, #tpu.memory_space<vmem>>, vector<32x128xf32>
      tpu.vector_store %arg7[%c0_19, %c0_20], %24 {strides = array<i32>} : memref<32x128xf32, #tpu.memory_space<vmem>>, vector<32x128xf32>,
    } else {
    }
    return
  }
  func.func @transform_0(%arg0: i32, %arg1: i32) -> (i32, i32) {
    %c0_i32 = arith.constant 0 : i32
    %c0_i32_0 = arith.constant 0 : i32
    return %arg0, %c0_i32 : i32, i32
  }
  func.func @transform_1(%arg0: i32, %arg1: i32) -> (i32, i32) {
    %c0_i32 = arith.constant 0 : i32
    %c0_i32_0 = arith.constant 0 : i32
    return %c0_i32, %arg1 : i32, i32
  }
  func.func @transform_2(%arg0: i32, %arg1: i32) -> (i32, i32) {
    %c0_i32 = arith.constant 0 : i32
    %c0_i32_0 = arith.constant 0 : i32
    return %c0_i32, %arg1 : i32, i32
  }
  func.func @transform_3(%arg0: i32, %arg1: i32) -> (i32, i32) {
    %c0_i32 = arith.constant 0 : i32
    %c0_i32_0 = arith.constant 0 : i32
    return %arg1, %c0_i32 : i32, i32
  }
  func.func @transform_4(%arg0: i32, %arg1: i32) -> (i32, i32) {
    %c0_i32 = arith.constant 0 : i32
    %c0_i32_0 = arith.constant 0 : i32
    %c0_i32_1 = arith.constant 0 : i32
    return %c0_i32, %c0_i32_0 : i32, i32
  }
  func.func @transform_5(%arg0: i32, %arg1: i32) -> (i32, i32) {
    %c0_i32 = arith.constant 0 : i32
    %c0_i32_0 = arith.constant 0 : i32
    return %arg0, %c0_i32 : i32, i32
  }
}

</mosaic_0001>

<llo_original>
// kernel: tpu_custom_call.1
$region0: #{tpu_custom_call.1}
  #allocation0 [shape = 'u32[]', space=smem, size = 0x4, offset = 0x4, fixed_abs, tag = 'smem constant byte address 0x4 - core index']
  #allocation1 [shape = 'u32[144,128]{1,0:T(1,128)}', space=vmem, size = 0x12000, scoped, tag = 'internal scratch']
  #allocation2 [shape = 'f32[32,128]{1,0:T(8,128)}', space=vmem, size = 0x4000, scoped, tag = 'scratch operand']
  %s0 = inlined_call_operand.hbm [shape: f32[64,128], index: 0, kind: input, shape index: {}]
  %s1 = inlined_call_operand.hbm [shape: bf16[128,512], index: 1, kind: input, shape index: {}]
  %s2 = inlined_call_operand.vmem [shape: f32[1,512], index: 2, kind: input, shape index: {}]
  %s3 = inlined_call_operand.hbm [shape: bf16[512,128], index: 3, kind: input, shape index: {}]
  %s4 = inlined_call_operand.vmem [shape: f32[1,128], index: 4, kind: input, shape index: {}]
  %s5 = inlined_call_operand.hbm [shape: f32[64,128], index: 5, kind: output, shape index: {}]
  %s6 = sld [smem:[#allocation0]]
  $region73: #{tpu_custom_call.1} parent=0
    _
  %s8 = ssub.s32 1, %s6
  %s9 = scalar_select 0, %s8, %s6
  $region1: #{tpu_custom_call.1} parent=0
    #allocation3 [shape = 'u8[32768]{0}', space=vmem, size = 0x8000, scoped, tag = 'input window, operand 0']
    #allocation4 [shape = 's32[2]{0}', space=sflag, size = 0x8, scoped, tag = 'scoped memory for tpu_custom_call.1']
    #allocation5 [shape = 's32[2]{0}', space=sflag, size = 0x8, scoped, tag = 'scoped memory for tpu_custom_call.1']
    #allocation6 [shape = 'u8[131072]{0}', space=vmem, size = 0x20000, scoped, tag = 'input window, operand 1']
    #allocation7 [shape = 's32[2]{0}', space=sflag, size = 0x8, scoped, tag = 'scoped memory for tpu_custom_call.1']
    #allocation8 [shape = 'u8[131072]{0}', space=vmem, size = 0x20000, scoped, tag = 'input window, operand 3']
    #allocation9 [shape = 'u8[32768]{0}', space=vmem, size = 0x8000, scoped, tag = 'output window, operand 0']
    %10 = vsyncpa [#allocation4], 0
    %s11 = scalar_lea.sflag [#allocation4], 1
    %12 = vsyncpa %s11, 0
    %13 = vsyncpa [#allocation7], 0
    %s14 = scalar_lea.sflag [#allocation7], 1
    %15 = vsyncpa %s14, 0
    %16 = vsyncpa [#allocation5], 0
    %s17 = scalar_lea.sflag [#allocation5], 1
    %18 = vsyncpa %s17, 0
    loop: start=0, step=1, limit=6
    $region2: #{tpu_custom_call.1} parent=1 // loop_pre_header
      _
    $region3: #{tpu_custom_call.1} parent=1 // loop_header
      %s20 = sphi 0, %s24
      %p21 = scmp.ge.s32.totalorder %s20, 6
      %s27 = sphi 0, %s39
      %s28 = sphi 0, %s35
      %s29 = sphi 0, %s27
      %s30 = sphi 0, %s28
      %s31 = sphi 0, %s29
      %s32 = sphi 0, %s30
      %s42 = sphi 0, %s44
      %s45 = sphi 0, %s42
      %s46 = sphi 0, %s45
      %s62 = sphi 0, %s46
      %s68 = sphi 0, %s70
      %s71 = sphi 0, %s68
      %s72 = sphi 0, %s71
      %s88 = sphi 0, %s72
      %s94 = sphi 0, %s96
      %s97 = sphi 0, %s94
      %s98 = sphi 0, %s97
      %s114 = sphi 0, %s98
      %s120 = sphi 0, %s122
      %s123 = sphi 0, %s120
      %s124 = sphi 0, %s123
      %s140 = sphi 0, %s124
      %s144 = sphi 0, %s144
      %s146 = sphi 0, %s144
      %s147 = sphi 0, %s146
      %s161 = sphi 0, %s147
      %s167 = sphi 0, %s169
      %s170 = sphi 0, %s167
      %s171 = sphi 0, %s170
      %s187 = sphi 0, %s171
    $region4: #{tpu_custom_call.1} parent=1 // loop_header_branch
      %23 = sbr.rel (%p21) target = $region8
    $region5: #{tpu_custom_call.1} parent=1 // loop_body
      %s25 = ssub.s32 %s20, 1
      %s26 = ssub.s32 %s20, 2
      %s33 = sadd.s32 1, %s28
      %p34 = scmp.ge.s32.totalorder %s33, 2
      %s35 = scalar_select %p34, 0, %s33
      %s36 = sadd.s32 1, %s27
      %s37 = scalar_select %p34, %s36, %s27
      %p38 = scmp.ge.s32.totalorder %s37, 2
      %s39 = scalar_select %p38, 0, %s37
      %s40 = ssub.s32 %s27, %s39
      %p41 = scmp.eq.s32.totalorder %s40, 0
      %s43 = sadd.s32 %s42, 1
      %s44 = scalar_select %p41, %s42, %s43
      %p47 = pneg %p41
      %p48 = scmp.eq.s32.totalorder %s20, 3
      %p49 = por %p47, %p48
      %p50 = scmp.ne.s32.totalorder %s42, %s45
      %p51 = scmp.eq.s32.totalorder %s20, 0
      %p52 = por %p50, %p51
      %p53 = scmp.ne.s32.totalorder %s42, %s45
      %p54 = scmp.eq.s32.totalorder %s25, 3
      %p55 = por %p53, %p54
      %p56 = scmp.ne.s32.totalorder %s45, %s46
      %p57 = scmp.eq.s32.totalorder %s25, 0
      %p58 = por %p56, %p57
      %p59 = scmp.ne.s32.totalorder %s45, %s46
      %p60 = scmp.eq.s32.totalorder %s26, 3
      %p61 = por %p59, %p60
      %p63 = scmp.ne.s32.totalorder %s46, %s62
      %p64 = scmp.eq.s32.totalorder %s26, 0
      %p65 = por %p63, %p64
      %s66 = ssub.s32 %s28, %s35
      %p67 = scmp.eq.s32.totalorder %s66, 0
      %s69 = sadd.s32 %s68, 1
      %s70 = scalar_select %p67, %s68, %s69
      %p73 = pneg %p67
      %p74 = scmp.eq.s32.totalorder %s20, 3
      %p75 = por %p73, %p74
      %p76 = scmp.ne.s32.totalorder %s68, %s71
      %p77 = scmp.eq.s32.totalorder %s20, 0
      %p78 = por %p76, %p77
      %p79 = scmp.ne.s32.totalorder %s68, %s71
      %p80 = scmp.eq.s32.totalorder %s25, 3
      %p81 = por %p79, %p80
      %p82 = scmp.ne.s32.totalorder %s71, %s72
      %p83 = scmp.eq.s32.totalorder %s25, 0
      %p84 = por %p82, %p83
      %p85 = scmp.ne.s32.totalorder %s71, %s72
      %p86 = scmp.eq.s32.totalorder %s26, 3
      %p87 = por %p85, %p86
      %p89 = scmp.ne.s32.totalorder %s72, %s88
      %p90 = scmp.eq.s32.totalorder %s26, 0
      %p91 = por %p89, %p90
      %s92 = ssub.s32 %s28, %s35
      %p93 = scmp.eq.s32.totalorder %s92, 0
      %s95 = sadd.s32 %s94, 1
      %s96 = scalar_select %p93, %s94, %s95
      %p99 = pneg %p93
      %p100 = scmp.eq.s32.totalorder %s20, 3
      %p101 = por %p99, %p100
      %p102 = scmp.ne.s32.totalorder %s94, %s97
      %p103 = scmp.eq.s32.totalorder %s20, 0
      %p104 = por %p102, %p103
      %p105 = scmp.ne.s32.totalorder %s94, %s97
      %p106 = scmp.eq.s32.totalorder %s25, 3
      %p107 = por %p105, %p106
      %p108 = scmp.ne.s32.totalorder %s97, %s98
      %p109 = scmp.eq.s32.totalorder %s25, 0
      %p110 = por %p108, %p109
      %p111 = scmp.ne.s32.totalorder %s97, %s98
      %p112 = scmp.eq.s32.totalorder %s26, 3
      %p113 = por %p111, %p112
      %p115 = scmp.ne.s32.totalorder %s98, %s114
      %p116 = scmp.eq.s32.totalorder %s26, 0
      %p117 = por %p115, %p116
      %s118 = ssub.s32 %s28, %s35
      %p119 = scmp.eq.s32.totalorder %s118, 0
      %s121 = sadd.s32 %s120, 1
      %s122 = scalar_select %p119, %s120, %s121
      %p125 = pneg %p119
      %p126 = scmp.eq.s32.totalorder %s20, 3
      %p127 = por %p125, %p126
      %p128 = scmp.ne.s32.totalorder %s120, %s123
      %p129 = scmp.eq.s32.totalorder %s20, 0
      %p130 = por %p128, %p129
      %p131 = scmp.ne.s32.totalorder %s120, %s123
      %p132 = scmp.eq.s32.totalorder %s25, 3
      %p133 = por %p131, %p132
      %p134 = scmp.ne.s32.totalorder %s123, %s124
      %p135 = scmp.eq.s32.totalorder %s25, 0
      %p136 = por %p134, %p135
      %p137 = scmp.ne.s32.totalorder %s123, %s124
      %p138 = scmp.eq.s32.totalorder %s26, 3
      %p139 = por %p137, %p138
      %p141 = scmp.ne.s32.totalorder %s124, %s140
      %p142 = scmp.eq.s32.totalorder %s26, 0
      %p143 = por %p141, %p142
      %s145 = sadd.s32 %s144, 1
      %p148 = scmp.eq.s32.totalorder %s20, 3
      %p149 = scmp.ne.s32.totalorder %s144, %s146
      %p150 = scmp.eq.s32.totalorder %s20, 0
      %p151 = por %p149, %p150
      %p152 = scmp.ne.s32.totalorder %s144, %s146
      %p153 = scmp.eq.s32.totalorder %s25, 3
      %p154 = por %p152, %p153
      %p155 = scmp.ne.s32.totalorder %s146, %s147
      %p156 = scmp.eq.s32.totalorder %s25, 0
      %p157 = por %p155, %p156
      %p158 = scmp.ne.s32.totalorder %s146, %s147
      %p159 = scmp.eq.s32.totalorder %s26, 3
      %p160 = por %p158, %p159
      %p162 = scmp.ne.s32.totalorder %s147, %s161
      %p163 = scmp.eq.s32.totalorder %s26, 0
      %p164 = por %p162, %p163
      %s165 = ssub.s32 %s27, %s39
      %p166 = scmp.eq.s32.totalorder %s165, 0
      %s168 = sadd.s32 %s167, 1
      %s169 = scalar_select %p166, %s167, %s168
      %p172 = pneg %p166
      %p173 = scmp.eq.s32.totalorder %s20, 3
      %p174 = por %p172, %p173
      %p175 = scmp.ne.s32.totalorder %s167, %s170
      %p176 = scmp.eq.s32.totalorder %s20, 0
      %p177 = por %p175, %p176
      %p178 = scmp.ne.s32.totalorder %s167, %s170
      %p179 = scmp.eq.s32.totalorder %s25, 3
      %p180 = por %p178, %p179
      %p181 = scmp.ne.s32.totalorder %s170, %s171
      %p182 = scmp.eq.s32.totalorder %s25, 0
      %p183 = por %p181, %p182
      %p184 = scmp.ne.s32.totalorder %s170, %s171
      %p185 = scmp.eq.s32.totalorder %s26, 3
      %p186 = por %p184, %p185
      %p188 = scmp.ne.s32.totalorder %s171, %s187
      %p189 = scmp.eq.s32.totalorder %s26, 0
      %p190 = por %p188, %p189
      %p191 = scmp.le.s32.totalorder 1, %s20
      %p192 = scmp.lt.s32.totalorder %s20, 5
      %p193 = pnand %p191, %p192
      %p194 = pneg %p193
      // Predicated region
      $region9: #{tpu_custom_call.1} parent=5 // pred_check
        _
      $region10: #{tpu_custom_call.1} parent=5 // pred_check_branch
        %196 = sbr.rel (%p193) target = $region12
      $region11: #{tpu_custom_call.1} parent=5 // pred_region
        %s197 = ssub.s32 %s20, 1
        // Predicated region
        $region13: #{tpu_custom_call.1} parent=11 // pred_check
          %p198 = pneg %p157
        $region14: #{tpu_custom_call.1} parent=11 // pred_check_branch
          %200 = sbr.rel (%p198) target = $region16
        $region15: #{tpu_custom_call.1} parent=11 // pred_region
          _
        $region16: #{tpu_custom_call.1} parent=11 // pred_fallthru
          _
      $region12: #{tpu_custom_call.1} parent=5 // pred_fallthru
        _
      %p201 = scmp.lt.s32.totalorder %s20, 4
      // Predicated region
      $region17: #{tpu_custom_call.1} parent=5 // pred_check
        %p202 = pneg %p201
      $region18: #{tpu_custom_call.1} parent=5 // pred_check_branch
        %204 = sbr.rel (%p202) target = $region20
      $region19: #{tpu_custom_call.1} parent=5 // pred_region
        // Predicated region
        $region21: #{tpu_custom_call.1} parent=19 // pred_check
          %p205 = pneg %p52
        $region22: #{tpu_custom_call.1} parent=19 // pred_check_branch
          %207 = sbr.rel (%p205) target = $region24
        $region23: #{tpu_custom_call.1} parent=19 // pred_region
          %s208 = sand.u32 %s42, 1
          %s209 = scalar_lea.sflag [#allocation4], %s208
          %s210 = sand.u32 %s42, 1
          %s211 = smul.addr %s210, 32
          %s212 = scalar_lea.vmem [#allocation3], %s211
          %s213 = smul.u32 4, %s27
          %s215 = ssub.s32 512, 512
          %216 = vsyncadd %s209, %s215
          %s217 = smul.addr %s213, 128
          %s218 = scalar_lea.hbm %s0, %s217
          %s219 = sshll.u32 %s212, 4
          %s220 = int_to_ptr.vmem [resolvable:$true] %s219
          %225 = dma.hbm_to_vmem [thread:$0]  %s218, 512, %s220, %s209, 128, 128, 8
        $region24: #{tpu_custom_call.1} parent=19 // pred_fallthru
          _
        // Predicated region
        $region25: #{tpu_custom_call.1} parent=19 // pred_check
          %p226 = pneg %p78
        $region26: #{tpu_custom_call.1} parent=19 // pred_check_branch
          %228 = sbr.rel (%p226) target = $region28
        $region27: #{tpu_custom_call.1} parent=19 // pred_region
          %s229 = sand.u32 %s20, 1
          %s230 = scalar_lea.sflag [#allocation7], %s229
          %s231 = sand.u32 %s68, 1
          %s232 = smul.addr %s231, 128
          %s233 = scalar_lea.vmem [#allocation6], %s232
          %s234 = smul.u32 2, %s28
          %s236 = ssub.s32 2048, 2048
          %237 = vsyncadd %s230, %s236
          %s238 = smul.addr %s234, 64
          %s239 = scalar_lea.hbm %s1, %s238
          %s240 = sshll.u32 %s233, 4
          %s241 = int_to_ptr.vmem [resolvable:$true] %s240
          %246 = dma.hbm_to_vmem [thread:$0]  %s239, 2048, %s241, %s230, 256, 128, 8
        $region28: #{tpu_custom_call.1} parent=19 // pred_fallthru
          _
        // Predicated region
        $region29: #{tpu_custom_call.1} parent=19 // pred_check
          %p247 = pneg %p104
        $region30: #{tpu_custom_call.1} parent=19 // pred_check_branch
          %249 = sbr.rel (%p247) target = $region32
        $region31: #{tpu_custom_call.1} parent=19 // pred_region
          %s250 = smul.u32 2, %s28
          %p251 = scmp.lt.s32.totalorder %s250, 3
          %s252 = scalar_select %p251, %s250, 3
          %s253 = scalar_lea.vmem %s2, %s252
          %s254 = smul.u32 2, %s28
        $region32: #{tpu_custom_call.1} parent=19 // pred_fallthru
          _
        // Predicated region
        $region33: #{tpu_custom_call.1} parent=19 // pred_check
          %p255 = pneg %p130
        $region34: #{tpu_custom_call.1} parent=19 // pred_check_branch
          %257 = sbr.rel (%p255) target = $region36
        $region35: #{tpu_custom_call.1} parent=19 // pred_region
          %s258 = sand.u32 %s20, 1
          %s259 = scalar_lea.sflag [#allocation7], %s258
          %s260 = sand.u32 %s120, 1
          %s261 = smul.addr %s260, 128
          %s262 = scalar_lea.vmem [#allocation8], %s261
          %s263 = smul.u32 32, %s28
          %s265 = ssub.s32 2048, 2048
          %266 = vsyncadd %s259, %s265
          %s267 = smul.addr %s263, 64
          %s268 = scalar_lea.hbm %s3, %s267
          %s269 = sshll.u32 %s262, 4
          %s270 = int_to_ptr.vmem [resolvable:$true] %s269
          %275 = dma.hbm_to_vmem [thread:$0]  %s268, 2048, %s270, %s259, 64, 64, 4
        $region36: #{tpu_custom_call.1} parent=19 // pred_fallthru
          _
      $region20: #{tpu_custom_call.1} parent=5 // pred_fallthru
        _
      %p276 = scmp.le.s32.totalorder 1, %s20
      %p277 = scmp.lt.s32.totalorder %s20, 5
      %p278 = pnand %p276, %p277
      %p279 = pneg %p278
      // Predicated region
      $region37: #{tpu_custom_call.1} parent=5 // pred_check
        _
      $region38: #{tpu_custom_call.1} parent=5 // pred_check_branch
        %281 = sbr.rel (%p278) target = $region40
      $region39: #{tpu_custom_call.1} parent=5 // pred_region
        %s282 = ssub.s32 %s20, 1
        %s283 = sand.u32 %s45, 1
        %s284 = scalar_lea.sflag [#allocation4], %s283
        %s285 = sand.u32 %s45, 1
        %s286 = smul.addr %s285, 32
        %s287 = scalar_lea.vmem [#allocation3], %s286
        // Predicated region
        $region41: #{tpu_custom_call.1} parent=39 // pred_check
          %p288 = pneg %p58
        $region42: #{tpu_custom_call.1} parent=39 // pred_check_branch
          %290 = sbr.rel (%p288) target = $region44
        $region43: #{tpu_custom_call.1} parent=39 // pred_region
          %291 = dma.done %s284, 512
        $region44: #{tpu_custom_call.1} parent=39 // pred_fallthru
          _
        %s292 = sand.u32 %s25, 1
        %s293 = scalar_lea.sflag [#allocation7], %s292
        %s294 = sand.u32 %s71, 1
        %s295 = smul.addr %s294, 128
        %s296 = scalar_lea.vmem [#allocation6], %s295
        // Predicated region
        $region45: #{tpu_custom_call.1} parent=39 // pred_check
          %p297 = pneg %p84
        $region46: #{tpu_custom_call.1} parent=39 // pred_check_branch
          %299 = sbr.rel (%p297) target = $region48
        $region47: #{tpu_custom_call.1} parent=39 // pred_region
          %300 = dma.done %s293, 2048
        $region48: #{tpu_custom_call.1} parent=39 // pred_fallthru
          _
        %s301 = sand.u32 %s25, 1
        %s302 = scalar_lea.sflag [#allocation7], %s301
        %s303 = sand.u32 %s123, 1
        %s304 = smul.addr %s303, 128
        %s305 = scalar_lea.vmem [#allocation8], %s304
        // Predicated region
        $region49: #{tpu_custom_call.1} parent=39 // pred_check
          %p306 = pneg %p136
        $region50: #{tpu_custom_call.1} parent=39 // pred_check_branch
          %308 = sbr.rel (%p306) target = $region52
        $region51: #{tpu_custom_call.1} parent=39 // pred_region
          %309 = dma.done %s302, 2048
        $region52: #{tpu_custom_call.1} parent=39 // pred_fallthru
          _
        %s310 = sand.u32 %s45, 1
        %s311 = scalar_lea.sflag [#allocation4], %s310
        %s312 = sand.u32 %s45, 1
        %s313 = smul.addr %s312, 32
        %s314 = scalar_lea.vmem [#allocation3], %s313
        %p315 = pneg %p58
        %p316 = pneg %p55
        %s317 = sand.u32 %s25, 1
        %s318 = scalar_lea.sflag [#allocation7], %s317
        %s319 = sand.u32 %s71, 1
        %s320 = smul.addr %s319, 128
        %s321 = scalar_lea.vmem [#allocation6], %s320
        %p322 = pneg %p84
        %p323 = pneg %p81
        %s324 = smul.u32 2, %s30
        %p325 = scmp.lt.s32.totalorder %s324, 3
        %s326 = scalar_select %p325, %s324, 3
        %s327 = scalar_lea.vmem %s2, %s326
        %p328 = pneg %p110
        %p329 = pneg %p107
        %s330 = sand.u32 %s25, 1
        %s331 = scalar_lea.sflag [#allocation7], %s330
        %s332 = sand.u32 %s123, 1
        %s333 = smul.addr %s332, 128
        %s334 = scalar_lea.vmem [#allocation8], %s333
        %p335 = pneg %p136
        %p336 = pneg %p133
        %p337 = pneg %p157
        %p338 = pneg %p154
        %p339 = pneg %p183
        %p340 = pneg %p180
        %s341 = sand.u32 %s170, 1
        %s342 = scalar_lea.sflag [#allocation5], %s341
        %s343 = sand.u32 %s170, 1
        %s344 = smul.addr %s343, 32
        %s345 = scalar_lea.vmem [#allocation9], %s344
        %s346 = smul.u32 4, %s29
        %s347 = smul.u32 2, %s30
        %s348 = smul.u32 2, %s30
        %p349 = scmp.lt.s32.totalorder %s348, 3
        %s350 = scalar_select %p349, %s348, 3
        %s351 = scalar_lea.vmem %s2, %s350
        %s352 = smul.u32 2, %s30
        %s353 = smul.u32 32, %s30
        %s354 = smul.u32 4, %s29
        %p356 = scmp.eq.s32.totalorder %s30, 0
        // Predicated region
        $region53: #{tpu_custom_call.1} parent=39 // pred_check
          %p357 = pneg %p356
        $region54: #{tpu_custom_call.1} parent=39 // pred_check_branch
          %359 = sbr.rel (%p357) target = $region56
        $region55: #{tpu_custom_call.1} parent=39 // pred_region
          %360 = vst [vmem:[#allocation2] sm:$0xff] 0.0
          %361 = vst [vmem:[#allocation2 + $0x8] sm:$0xff] 0.0
          %362 = vst [vmem:[#allocation2 + $0x10] sm:$0xff] 0.0
          %363 = vst [vmem:[#allocation2 + $0x18] sm:$0xff] 0.0
        $region56: #{tpu_custom_call.1} parent=39 // pred_fallthru
          _
        %v364 = vld [vmem:[%s287] sm:$0xff]
        %v365 = vld [vmem:[%s287 + $0x8] sm:$0xff]
        %v366 = vld [vmem:[%s287 + $0x10] sm:$0xff]
        %v367 = vld [vmem:[%s287 + $0x18] sm:$0xff]
        %v368 = vpack.c.bf16 %v365, %v364
        %v369 = vpack.c.bf16 %v367, %v366
        %v370 = vld [vmem:[%s296] sm:$0xff]
        %v371 = vld [vmem:[%s296 + $0x8] sm:$0xff]
        %v372 = vld [vmem:[%s296 + $0x10] sm:$0xff]
        %v373 = vld [vmem:[%s296 + $0x18] sm:$0xff]
        %v374 = vld [vmem:[%s296 + $0x20] sm:$0xff]
        %v375 = vld [vmem:[%s296 + $0x28] sm:$0xff]
        %v376 = vld [vmem:[%s296 + $0x30] sm:$0xff]
        %v377 = vld [vmem:[%s296 + $0x38] sm:$0xff]
        %v378 = vld [vmem:[%s296 + $0x40] sm:$0xff]
        %v379 = vld [vmem:[%s296 + $0x48] sm:$0xff]
        %v380 = vld [vmem:[%s296 + $0x50] sm:$0xff]
        %v381 = vld [vmem:[%s296 + $0x58] sm:$0xff]
        %v382 = vld [vmem:[%s296 + $0x60] sm:$0xff]
        %v383 = vld [vmem:[%s296 + $0x68] sm:$0xff]
        %v384 = vld [vmem:[%s296 + $0x70] sm:$0xff]
        %v385 = vld [vmem:[%s296 + $0x78] sm:$0xff]
        %v386 = vld [vmem:[%s351] sm:$0x3]
        %v388 = vlaneseq
        %v389 = vshrl.u32 %v388, 7
        %v390 = vsub.s32 0, %v389
        %v391 = vrot.slane %v386, %v390
        %v392 = vlaneseq
        %v393 = vshrl.u32 %v392, 7
        %v394 = vsub.s32 1, %v393
        %v395 = vrot.slane %v386, %v394
        %v414 = vunpack.c.l.b16 %v370
        %v415 = vunpack.c.h.b16 %v370
        %v416 = vunpack.c.l.b16 %v371
        %v417 = vunpack.c.h.b16 %v371
        %v418 = vunpack.c.l.b16 %v372
        %v419 = vunpack.c.h.b16 %v372
        %v420 = vunpack.c.l.b16 %v373
        %v421 = vunpack.c.h.b16 %v373
        %v422 = vunpack.c.l.b16 %v374
        %v423 = vunpack.c.h.b16 %v374
        %v424 = vunpack.c.l.b16 %v375
        %v425 = vunpack.c.h.b16 %v375
        %v426 = vunpack.c.l.b16 %v376
        %v427 = vunpack.c.h.b16 %v376
        %v428 = vunpack.c.l.b16 %v377
        %v429 = vunpack.c.h.b16 %v377
        %v430 = vunpack.c.l.b16 %v378
        %v431 = vunpack.c.h.b16 %v378
        %v432 = vunpack.c.l.b16 %v379
        %v433 = vunpack.c.h.b16 %v379
        %v434 = vunpack.c.l.b16 %v380
        %v435 = vunpack.c.h.b16 %v380
        %v436 = vunpack.c.l.b16 %v381
        %v437 = vunpack.c.h.b16 %v381
        %v438 = vunpack.c.l.b16 %v382
        %v439 = vunpack.c.h.b16 %v382
        %v440 = vunpack.c.l.b16 %v383
        %v441 = vunpack.c.h.b16 %v383
        %v442 = vunpack.c.l.b16 %v384
        %v443 = vunpack.c.h.b16 %v384
        %v444 = vunpack.c.l.b16 %v385
        %v445 = vunpack.c.h.b16 %v385
        %v446 = vpack.c.b16 %v416, %v414
        %v447 = vpack.c.b16 %v417, %v415
        %v448 = vpack.c.b16 %v420, %v418
        %v449 = vpack.c.b16 %v421, %v419
        %v450 = vpack.c.b16 %v424, %v422
        %v451 = vpack.c.b16 %v425, %v423
        %v452 = vpack.c.b16 %v428, %v426
        %v453 = vpack.c.b16 %v429, %v427
        %v454 = vpack.c.b16 %v432, %v430
        %v455 = vpack.c.b16 %v433, %v431
        %v456 = vpack.c.b16 %v436, %v434
        %v457 = vpack.c.b16 %v437, %v435
        %v458 = vpack.c.b16 %v440, %v438
        %v459 = vpack.c.b16 %v441, %v439
        %v460 = vpack.c.b16 %v444, %v442
        %v461 = vpack.c.b16 %v445, %v443
        %478 = vmatprep.subr.bf16.mxu0 %v447
        %479 = vmatpush1.bf16.msra.mxu0 %v446
        %480 = vmatprep.subr.bf16.mxu0 %v449
        %481 = vmatpush1.bf16.msra.mxu0 %v448
        %482 = vmatprep.subr.bf16.mxu0 %v451
        %483 = vmatpush1.bf16.msra.mxu0 %v450
        %484 = vmatprep.subr.bf16.mxu0 %v453
        %485 = vmatpush1.bf16.msra.mxu0 %v452
        %486 = vmatprep.subr.bf16.mxu0 %v455
        %487 = vmatpush1.bf16.msra.mxu0 %v454
        %488 = vmatprep.subr.bf16.mxu0 %v457
        %489 = vmatpush1.bf16.msra.mxu0 %v456
        %490 = vmatprep.subr.bf16.mxu0 %v459
        %491 = vmatpush1.bf16.msra.mxu0 %v458
        %492 = vmatprep.subr.bf16.mxu0 %v461
        %493 = vmatpush1.bf16.msra.mxu0 %v460
        %494 = vmatprep.subr.bf16.mxu0 0
        %495 = vmatpush1.bf16.msra.mxu0 0
        %496 = vmatprep.subr.bf16.mxu0 0
        %497 = vmatpush1.bf16.msra.mxu0 0
        %498 = vmatprep.subr.bf16.mxu0 0
        %499 = vmatpush1.bf16.msra.mxu0 0
        %500 = vmatprep.subr.bf16.mxu0 0
        %501 = vmatpush1.bf16.msra.mxu0 0
        %502 = vmatprep.subr.bf16.mxu0 0
        %503 = vmatpush1.bf16.msra.mxu0 0
        %504 = vmatprep.subr.bf16.mxu0 0
        %505 = vmatpush1.bf16.msra.mxu0 0
        %506 = vmatprep.subr.bf16.mxu0 0
        %507 = vmatpush1.bf16.msra.mxu0 0
        %508 = vmatprep.subr.bf16.mxu0 0
        %509 = vmatpush1.bf16.msra.mxu0 0
        %510 = vmatprep.mubr.bf16.mxu0 0
        %511 = vmatmul.mubr.bf16.gmra.mrb[0].mxu0 %v368
        %v512 = vpop.f32.mrb[0].mxu0
        %v513 = vadd.f32 %v391, %v512
        %v514 = vpop.f32.mrb[0].mxu0
        %v515 = vadd.f32 %v395, %v514
        %v516 = vpop.f32.mrb[0].mxu0
        %v517 = vadd.f32 %v391, %v516
        %v518 = vpop.f32.mrb[0].mxu0
        %v519 = vadd.f32 %v395, %v518
        %520 = vmatprep.mubr.bf16.mxu0 0
        %521 = vmatmul.mubr.bf16.gmra.mrb[0].mxu0 %v369
        %v522 = vpop.f32.mrb[0].mxu0
        %v523 = vadd.f32 %v391, %v522
        %v524 = vpop.f32.mrb[0].mxu0
        %v525 = vadd.f32 %v395, %v524
        %v526 = vpop.f32.mrb[0].mxu0
        %v527 = vadd.f32 %v391, %v526
        %v528 = vpop.f32.mrb[0].mxu0
        %v529 = vadd.f32 %v395, %v528
        %530 = vdwg.mxu0
        %v531 = vmax.f32 %v513, 0.0
        %v532 = vmax.f32 %v515, 0.0
        %v533 = vmax.f32 %v517, 0.0
        %v534 = vmax.f32 %v519, 0.0
        %v535 = vmax.f32 %v523, 0.0
        %v536 = vmax.f32 %v525, 0.0
        %v537 = vmax.f32 %v527, 0.0
        %v538 = vmax.f32 %v529, 0.0
        %v539 = vld [vmem:[#allocation2] sm:$0xff]
        %v540 = vld [vmem:[#allocation2 + $0x8] sm:$0xff]
        %v541 = vld [vmem:[#allocation2 + $0x10] sm:$0xff]
        %v542 = vld [vmem:[#allocation2 + $0x18] sm:$0xff]
        %v543 = vpack.c.bf16 %v533, %v531
        %v544 = vpack.c.bf16 %v534, %v532
        %v545 = vpack.c.bf16 %v537, %v535
        %v546 = vpack.c.bf16 %v538, %v536
        %v547 = vld [vmem:[%s305] sm:$0xf]
        %v548 = vld [vmem:[%s305 + $0x4] sm:$0xf]
        %v549 = vld [vmem:[%s305 + $0x8] sm:$0xf]
        %v550 = vld [vmem:[%s305 + $0xc] sm:$0xf]
        %v551 = vld [vmem:[%s305 + $0x10] sm:$0xf]
        %v552 = vld [vmem:[%s305 + $0x14] sm:$0xf]
        %v553 = vld [vmem:[%s305 + $0x18] sm:$0xf]
        %v554 = vld [vmem:[%s305 + $0x1c] sm:$0xf]
        %v555 = vld [vmem:[%s305 + $0x20] sm:$0xf]
        %v556 = vld [vmem:[%s305 + $0x24] sm:$0xf]
        %v557 = vld [vmem:[%s305 + $0x28] sm:$0xf]
        %v558 = vld [vmem:[%s305 + $0x2c] sm:$0xf]
        %v559 = vld [vmem:[%s305 + $0x30] sm:$0xf]
        %v560 = vld [vmem:[%s305 + $0x34] sm:$0xf]
        %v561 = vld [vmem:[%s305 + $0x38] sm:$0xf]
        %v562 = vld [vmem:[%s305 + $0x3c] sm:$0xf]
        %v563 = vld [vmem:[%s305 + $0x40] sm:$0xf]
        %v564 = vld [vmem:[%s305 + $0x44] sm:$0xf]
        %v565 = vld [vmem:[%s305 + $0x48] sm:$0xf]
        %v566 = vld [vmem:[%s305 + $0x4c] sm:$0xf]
        %v567 = vld [vmem:[%s305 + $0x50] sm:$0xf]
        %v568 = vld [vmem:[%s305 + $0x54] sm:$0xf]
        %v569 = vld [vmem:[%s305 + $0x58] sm:$0xf]
        %v570 = vld [vmem:[%s305 + $0x5c] sm:$0xf]
        %v571 = vld [vmem:[%s305 + $0x60] sm:$0xf]
        %v572 = vld [vmem:[%s305 + $0x64] sm:$0xf]
        %v573 = vld [vmem:[%s305 + $0x68] sm:$0xf]
        %v574 = vld [vmem:[%s305 + $0x6c] sm:$0xf]
        %v575 = vld [vmem:[%s305 + $0x70] sm:$0xf]
        %v576 = vld [vmem:[%s305 + $0x74] sm:$0xf]
        %v577 = vld [vmem:[%s305 + $0x78] sm:$0xf]
        %v578 = vld [vmem:[%s305 + $0x7c] sm:$0xf]
        %v611 = vunpack.c.l.b16 %v547
        %v612 = vunpack.c.l.b16 %v548
        %v613 = vunpack.c.l.b16 %v549
        %v614 = vunpack.c.l.b16 %v550
        %v615 = vunpack.c.l.b16 %v551
        %v616 = vunpack.c.l.b16 %v552
        %v617 = vunpack.c.l.b16 %v553
        %v618 = vunpack.c.l.b16 %v554
        %v619 = vunpack.c.l.b16 %v555
        %v620 = vunpack.c.l.b16 %v556
        %v621 = vunpack.c.l.b16 %v557
        %v622 = vunpack.c.l.b16 %v558
        %v623 = vunpack.c.l.b16 %v559
        %v624 = vunpack.c.l.b16 %v560
        %v625 = vunpack.c.l.b16 %v561
        %v626 = vunpack.c.l.b16 %v562
        %v627 = vunpack.c.l.b16 %v563
        %v628 = vunpack.c.l.b16 %v564
        %v629 = vunpack.c.l.b16 %v565
        %v630 = vunpack.c.l.b16 %v566
        %v631 = vunpack.c.l.b16 %v567
        %v632 = vunpack.c.l.b16 %v568
        %v633 = vunpack.c.l.b16 %v569
        %v634 = vunpack.c.l.b16 %v570
        %v635 = vunpack.c.l.b16 %v571
        %v636 = vunpack.c.l.b16 %v572
        %v637 = vunpack.c.l.b16 %v573
        %v638 = vunpack.c.l.b16 %v574
        %v639 = vunpack.c.l.b16 %v575
        %v640 = vunpack.c.l.b16 %v576
        %v641 = vunpack.c.l.b16 %v577
        %v642 = vunpack.c.l.b16 %v578
        %v643 = vpack.c.b16 %v612, %v611
        %v644 = vpack.c.b16 %v614, %v613
        %v645 = vpack.c.b16 %v616, %v615
        %v646 = vpack.c.b16 %v618, %v617
        %v647 = vpack.c.b16 %v620, %v619
        %v648 = vpack.c.b16 %v622, %v621
        %v649 = vpack.c.b16 %v624, %v623
        %v650 = vpack.c.b16 %v626, %v625
        %v651 = vpack.c.b16 %v628, %v627
        %v652 = vpack.c.b16 %v630, %v629
        %v653 = vpack.c.b16 %v632, %v631
        %v654 = vpack.c.b16 %v634, %v633
        %v655 = vpack.c.b16 %v636, %v635
        %v656 = vpack.c.b16 %v638, %v637
        %v657 = vpack.c.b16 %v640, %v639
        %v658 = vpack.c.b16 %v642, %v641
        %675 = vmatprep.subr.bf16.mxu0 0
        %676 = vmatpush1.bf16.msra.mxu0 %v643
        %677 = vmatprep.subr.bf16.mxu0 0
        %678 = vmatpush1.bf16.msra.mxu0 %v644
        %679 = vmatprep.subr.bf16.mxu0 0
        %680 = vmatpush1.bf16.msra.mxu0 %v645
        %681 = vmatprep.subr.bf16.mxu0 0
        %682 = vmatpush1.bf16.msra.mxu0 %v646
        %683 = vmatprep.subr.bf16.mxu0 0
        %684 = vmatpush1.bf16.msra.mxu0 %v647
        %685 = vmatprep.subr.bf16.mxu0 0
        %686 = vmatpush1.bf16.msra.mxu0 %v648
        %687 = vmatprep.subr.bf16.mxu0 0
        %688 = vmatpush1.bf16.msra.mxu0 %v649
        %689 = vmatprep.subr.bf16.mxu0 0
        %690 = vmatpush1.bf16.msra.mxu0 %v650
        %691 = vmatprep.subr.bf16.mxu0 0
        %692 = vmatpush1.bf16.msra.mxu0 %v651
        %693 = vmatprep.subr.bf16.mxu0 0
        %694 = vmatpush1.bf16.msra.mxu0 %v652
        %695 = vmatprep.subr.bf16.mxu0 0
        %696 = vmatpush1.bf16.msra.mxu0 %v653
        %697 = vmatprep.subr.bf16.mxu0 0
        %698 = vmatpush1.bf16.msra.mxu0 %v654
        %699 = vmatprep.subr.bf16.mxu0 0
        %700 = vmatpush1.bf16.msra.mxu0 %v655
        %701 = vmatprep.subr.bf16.mxu0 0
        %702 = vmatpush1.bf16.msra.mxu0 %v656
        %703 = vmatprep.subr.bf16.mxu0 0
        %704 = vmatpush1.bf16.msra.mxu0 %v657
        %705 = vmatprep.subr.bf16.mxu0 0
        %706 = vmatpush1.bf16.msra.mxu0 %v658
        %707 = vmatprep.mubr.bf16.mxu0 %v544
        %708 = vmatmul.mubr.bf16.gmra.mrb[0].mxu0 %v543
        %v709 = vpop.f32.mrb[0].mxu0
        %v710 = vadd.f32 0.0, %v709
        %v711 = vpop.f32.mrb[0].mxu0
        %v712 = vpop.f32.mrb[0].mxu0
        %v713 = vadd.f32 0.0, %v712
        %v714 = vpop.f32.mrb[0].mxu0
        %715 = vmatprep.mubr.bf16.mxu0 %v546
        %716 = vmatmul.mubr.bf16.gmra.mrb[0].mxu0 %v545
        %v717 = vpop.f32.mrb[0].mxu0
        %v718 = vadd.f32 0.0, %v717
        %v719 = vpop.f32.mrb[0].mxu0
        %v720 = vpop.f32.mrb[0].mxu0
        %v721 = vadd.f32 0.0, %v720
        %v722 = vpop.f32.mrb[0].mxu0
        %723 = vdwg.mxu0
        %v724 = vadd.f32 %v539, %v710
        %v725 = vadd.f32 %v540, %v713
        %v726 = vadd.f32 %v541, %v718
        %v727 = vadd.f32 %v542, %v721
        %728 = vst [vmem:[#allocation2] sm:$0xff] %v724
        %729 = vst [vmem:[#allocation2 + $0x8] sm:$0xff] %v725
        %730 = vst [vmem:[#allocation2 + $0x10] sm:$0xff] %v726
        %731 = vst [vmem:[#allocation2 + $0x18] sm:$0xff] %v727
        %p732 = scmp.eq.s32.totalorder %s30, 1
        // Predicated region
        $region57: #{tpu_custom_call.1} parent=39 // pred_check
          %p733 = pneg %p732
        $region58: #{tpu_custom_call.1} parent=39 // pred_check_branch
          %735 = sbr.rel (%p733) target = $region60
        $region59: #{tpu_custom_call.1} parent=39 // pred_region
          %v736 = vld [vmem:[#allocation2] sm:$0xff]
          %v737 = vld [vmem:[#allocation2 + $0x8] sm:$0xff]
          %v738 = vld [vmem:[#allocation2 + $0x10] sm:$0xff]
          %v739 = vld [vmem:[#allocation2 + $0x18] sm:$0xff]
          %v740 = vld [vmem:[%s4] sm:$0x1]
          %v742 = vlaneseq
          %v743 = vshrl.u32 %v742, 7
          %v744 = vsub.s32 0, %v743
          %v745 = vrot.slane %v740, %v744
          %v747 = vadd.f32 %v736, %v745
          %v748 = vadd.f32 %v737, %v745
          %v749 = vadd.f32 %v738, %v745
          %v750 = vadd.f32 %v739, %v745
          %751 = vst [vmem:[%s345] sm:$0xff] %v747
          %752 = vst [vmem:[%s345 + $0x8] sm:$0xff] %v748
          %753 = vst [vmem:[%s345 + $0x10] sm:$0xff] %v749
          %754 = vst [vmem:[%s345 + $0x18] sm:$0xff] %v750
        $region60: #{tpu_custom_call.1} parent=39 // pred_fallthru
          _
        %s755 = sand.u32 %s170, 1
        %s756 = scalar_lea.sflag [#allocation5], %s755
        %s757 = sand.u32 %s170, 1
        %s758 = smul.addr %s757, 32
        %s759 = scalar_lea.vmem [#allocation9], %s758
        // Predicated region
        $region61: #{tpu_custom_call.1} parent=39 // pred_check
          %p760 = pneg %p180
        $region62: #{tpu_custom_call.1} parent=39 // pred_check_branch
          %762 = sbr.rel (%p760) target = $region64
        $region63: #{tpu_custom_call.1} parent=39 // pred_region
          %s763 = smul.u32 4, %s29
          %s765 = ssub.s32 512, 512
          %766 = vsyncadd %s756, %s765
          %s767 = smul.addr %s763, 128
          %s768 = scalar_lea.hbm %s5, %s767
          %s769 = sshll.u32 %s759, 4
          %s770 = int_to_ptr.vmem [resolvable:$true] %s769
          %775 = dma.vmem_to_hbm [thread:$0]  %s770, 512, %s768, %s756, 128, 128, 8
        $region64: #{tpu_custom_call.1} parent=39 // pred_fallthru
          _
      $region40: #{tpu_custom_call.1} parent=5 // pred_fallthru
        _
      %p776 = scmp.le.s32.totalorder 2, %s20
      // Predicated region
      $region65: #{tpu_custom_call.1} parent=5 // pred_check
        %p777 = pneg %p776
      $region66: #{tpu_custom_call.1} parent=5 // pred_check_branch
        %779 = sbr.rel (%p777) target = $region68
      $region67: #{tpu_custom_call.1} parent=5 // pred_region
        %s780 = ssub.s32 %s20, 2
        // Predicated region
        $region69: #{tpu_custom_call.1} parent=67 // pred_check
          %p781 = pneg %p186
        $region70: #{tpu_custom_call.1} parent=67 // pred_check_branch
          %783 = sbr.rel (%p781) target = $region72
        $region71: #{tpu_custom_call.1} parent=67 // pred_region
          %s784 = sand.u32 %s171, 1
          %s785 = scalar_lea.sflag [#allocation5], %s784
          %s786 = sand.u32 %s171, 1
          %s787 = smul.addr %s786, 32
          %s788 = scalar_lea.vmem [#allocation9], %s787
          %789 = dma.done %s785, 512
        $region72: #{tpu_custom_call.1} parent=67 // pred_fallthru
          _
      $region68: #{tpu_custom_call.1} parent=5 // pred_fallthru
        _
    $region6: #{tpu_custom_call.1} parent=1 // loop_footer
      %s24 = sadd.s32 1, %s20
    $region7: #{tpu_custom_call.1} parent=1 // loop_footer_branch
      %19 = sbr.rel target = $region3
    $region8: #{tpu_custom_call.1} parent=1 // loop_exit
      _
    %790 = vsyncpa [#allocation4], 1
    %s791 = scalar_lea.sflag [#allocation4], 1
    %792 = vsyncpa %s791, 1
    %793 = vsyncpa [#allocation7], 1
    %s794 = scalar_lea.sflag [#allocation7], 1
    %795 = vsyncpa %s794, 1
    %796 = vsyncpa [#allocation5], 1
    %s797 = scalar_lea.sflag [#allocation5], 1
    %798 = vsyncpa %s797, 1

</llo_original>
